<compile_context>
chip_gen: v7x
topology: tpu7x:2x2x1
jax: 0.10.0
libtpu: 0.0.40
codegen_flags: <defaults>
</compile_context>

<pallas_src>
import functools

import jax
import jax.numpy as jnp
from jax.experimental import pallas as pl
from jax.experimental.pallas import tpu as pltpu

N_ITEMS = 2  # number of dropped-out streams (fixed at trace time)


def _independent_dropout_kernel(m1_ref, m2_ref, x1_ref, x2_ref, o1_ref, o2_ref):
    """Row-tiled kernel: per-row scaled masks, lane-broadcast multiply over H."""
    m1 = m1_ref[...]                                   # (tile_r, 1) f32 in {0, 1}
    m2 = m2_ref[...]
    total = m1 + m2
    scale = jnp.float32(N_ITEMS) / jnp.maximum(total, jnp.float32(1.0))

    s1 = (m1 * scale).astype(x1_ref.dtype)             # (tile_r, 1), native dtype
    o1_ref[...] = x1_ref[...] * s1                     # lane-broadcast over H
    s2 = (m2 * scale).astype(x2_ref.dtype)
    o2_ref[...] = x2_ref[...] * s2


def _choose_tile_rows(n_rows, row_bytes):
    """Row tile: <= 512 rows and roughly <= 2 MiB per operand block."""
    target = max(8, min(512, (2 * 1024 * 1024) // max(row_bytes, 1)))
    target = max(8, (target // 8) * 8)                 # keep sublane-aligned
    if n_rows <= target:
        return n_rows                                  # single block == full dim
    return target


@functools.partial(jax.jit, static_argnames=("p", "training"))
def independent_dropout(x1, x2, seed, p=0.5, training=True):
    """Pallas-backed IndependentDropout over two items of shape (B, S, H)."""
    if not training:
        return x1, x2

    B, S, H = x1.shape
    assert x2.shape == (B, S, H)
    R = B * S

    # Per-(b, s) Bernoulli keep-masks, one per item (tiny: R elements each).
    key = jax.random.PRNGKey(seed)
    k1, k2 = jax.random.split(key)
    m1 = jax.random.bernoulli(k1, 1.0 - p, (R, 1)).astype(jnp.float32)
    m2 = jax.random.bernoulli(k2, 1.0 - p, (R, 1)).astype(jnp.float32)

    x1f = x1.reshape(R, H)
    x2f = x2.reshape(R, H)

    tile_r = _choose_tile_rows(R, H * x1.dtype.itemsize)
    pad = (-R) % tile_r
    if pad:
        x1f = jnp.pad(x1f, ((0, pad), (0, 0)))
        x2f = jnp.pad(x2f, ((0, pad), (0, 0)))
        m1 = jnp.pad(m1, ((0, pad), (0, 0)))
        m2 = jnp.pad(m2, ((0, pad), (0, 0)))
    Rp = R + pad

    row_spec = pl.BlockSpec((tile_r, 1), lambda i: (i, 0))
    x_spec = pl.BlockSpec((tile_r, H), lambda i: (i, 0))

    o1f, o2f = pl.pallas_call(
        _independent_dropout_kernel,
        out_shape=(
            jax.ShapeDtypeStruct((Rp, H), x1.dtype),
            jax.ShapeDtypeStruct((Rp, H), x2.dtype),
        ),
        grid=(Rp // tile_r,),
        in_specs=[row_spec, row_spec, x_spec, x_spec],
        out_specs=(x_spec, x_spec),
        compiler_params=pltpu.CompilerParams(
            dimension_semantics=("parallel",)),
    )(m1, m2, x1f, x2f)

    if pad:
        o1f = o1f[:R]
        o2f = o2f[:R]
    return o1f.reshape(B, S, H), o2f.reshape(B, S, H)


if __name__ == "__main__":
    key = jax.random.PRNGKey(0)
    k1, k2 = jax.random.split(key)

    B, S, H = 2, 8, 32
    x1 = jax.random.normal(k1, (B, S, H), dtype=jnp.float32)
    x2 = jax.random.normal(k2, (B, S, H), dtype=jnp.float32)

    o1, o2 = independent_dropout(x1, x2, seed=1234, training=True)
    o1, o2 = jax.block_until_ready((o1, o2))

    # Per-(b, s) multiplier must be constant across H and lie in {0, 1, 2}
    # (p=0.5, n_items=2 -> scale = 2 / max(total, 1)).
    ratio1 = o1 / jnp.where(jnp.abs(x1) > 0, x1, 1.0)
    per_row1 = ratio1[:, :, 0:1]
    assert bool(jnp.all(jnp.abs(ratio1 - per_row1) < 1e-5)), "mask not constant over H"
    vals1 = jnp.round(per_row1)
    assert bool(jnp.all((vals1 >= 0) & (vals1 <= N_ITEMS))), "mask*scale out of range"

    ratio2 = o2 / jnp.where(jnp.abs(x2) > 0, x2, 1.0)
    per_row2 = ratio2[:, :, 0:1]
    assert bool(jnp.all(jnp.abs(ratio2 - per_row2) < 1e-5)), "mask not constant over H"

    # Per-row, sum over items of (mask*scale) is either 0 (both dropped) or n_items.
    row_sum = per_row1[..., 0] + per_row2[..., 0]
    ok = (jnp.abs(row_sum) < 1e-5) | (jnp.abs(row_sum - N_ITEMS) < 1e-5)
    assert bool(jnp.all(ok)), "scale normalization violated"

    # Eval mode is identity.
    e1, e2 = independent_dropout(x1, x2, seed=1234, training=False)
    assert bool(jnp.all(e1 == x1)) and bool(jnp.all(e2 == x2))

    print("KERNEL_OK")
</pallas_src>

<mosaic_0001>
module attributes {stable_mosaic.version = 11 : i64} {
  func.func @_independent_dropout_kernel(%arg0: i32, %arg1: memref<16x1xf32, #tpu.memory_space<vmem>>, %arg2: memref<16x1xf32, #tpu.memory_space<vmem>>, %arg3: memref<16x32xf32, #tpu.memory_space<vmem>>, %arg4: memref<16x32xf32, #tpu.memory_space<vmem>>, %arg5: memref<16x32xf32, #tpu.memory_space<vmem>>, %arg6: memref<16x32xf32, #tpu.memory_space<vmem>>) attributes {dimension_semantics = [#tpu.dimension_semantics<parallel>], iteration_bounds = array<i64: 1>, scalar_prefetch = 0 : i64, scratch_operands = 0 : i64, tpu.core_type = #tpu.core_type<tc>, window_params = [{transform_indices = @transform_0, window_bounds = array<i64: 16, 1>}, {transform_indices = @transform_1, window_bounds = array<i64: 16, 1>}, {transform_indices = @transform_2, window_bounds = array<i64: 16, 32>}, {transform_indices = @transform_3, window_bounds = array<i64: 16, 32>}, {transform_indices = @transform_4, window_bounds = array<i64: 16, 32>}, {transform_indices = @transform_5, window_bounds = array<i64: 16, 32>}]} {
    %c0 = arith.constant 0 : index
    %c0_0 = arith.constant 0 : index
    %0 = vector.load %arg1[%c0, %c0_0] : memref<16x1xf32, #tpu.memory_space<vmem>>, vector<16x1xf32>
    %c0_1 = arith.constant 0 : index
    %c0_2 = arith.constant 0 : index
    %1 = vector.load %arg2[%c0_1, %c0_2] : memref<16x1xf32, #tpu.memory_space<vmem>>, vector<16x1xf32>
    %2 = arith.addf %0, %1 : vector<16x1xf32>
    %cst = arith.constant 1.000000e+00 : f32
    %3 = vector.broadcast %cst : f32 to vector<16x1xf32>
    %4 = arith.maximumf %2, %3 : vector<16x1xf32>
    %cst_3 = arith.constant 2.000000e+00 : f32
    %5 = vector.broadcast %cst_3 : f32 to vector<16x1xf32>
    %6 = arith.divf %5, %4 : vector<16x1xf32>
    %7 = arith.mulf %0, %6 : vector<16x1xf32>
    %c0_4 = arith.constant 0 : index
    %c0_5 = arith.constant 0 : index
    %8 = vector.load %arg3[%c0_4, %c0_5] : memref<16x32xf32, #tpu.memory_space<vmem>>, vector<16x32xf32>
    %9 = vector.broadcast %7 : vector<16x1xf32> to vector<16x32xf32>
    %10 = arith.mulf %8, %9 : vector<16x32xf32>
    %c0_6 = arith.constant 0 : index
    %c0_7 = arith.constant 0 : index
    %11 = vector.load %arg5[%c0_6, %c0_7] : memref<16x32xf32, #tpu.memory_space<vmem>>, vector<16x32xf32>
    tpu.vector_store %arg5[%c0_6, %c0_7], %10 {strides = array<i32>} : memref<16x32xf32, #tpu.memory_space<vmem>>, vector<16x32xf32>,
    %12 = arith.mulf %1, %6 : vector<16x1xf32>
    %c0_8 = arith.constant 0 : index
    %c0_9 = arith.constant 0 : index
    %13 = vector.load %arg4[%c0_8, %c0_9] : memref<16x32xf32, #tpu.memory_space<vmem>>, vector<16x32xf32>
    %14 = vector.broadcast %12 : vector<16x1xf32> to vector<16x32xf32>
    %15 = arith.mulf %13, %14 : vector<16x32xf32>
    %c0_10 = arith.constant 0 : index
    %c0_11 = arith.constant 0 : index
    %16 = vector.load %arg6[%c0_10, %c0_11] : memref<16x32xf32, #tpu.memory_space<vmem>>, vector<16x32xf32>
    tpu.vector_store %arg6[%c0_10, %c0_11], %15 {strides = array<i32>} : memref<16x32xf32, #tpu.memory_space<vmem>>, vector<16x32xf32>,
    return
  }
  func.func @transform_0(%arg0: i32) -> (i32, i32) {
    %c0_i32 = arith.constant 0 : i32
    %c0_i32_0 = arith.constant 0 : i32
    return %arg0, %c0_i32 : i32, i32
  }
  func.func @transform_1(%arg0: i32) -> (i32, i32) {
    %c0_i32 = arith.constant 0 : i32
    %c0_i32_0 = arith.constant 0 : i32
    return %arg0, %c0_i32 : i32, i32
  }
  func.func @transform_2(%arg0: i32) -> (i32, i32) {
    %c0_i32 = arith.constant 0 : i32
    %c0_i32_0 = arith.constant 0 : i32
    return %arg0, %c0_i32 : i32, i32
  }
  func.func @transform_3(%arg0: i32) -> (i32, i32) {
    %c0_i32 = arith.constant 0 : i32
    %c0_i32_0 = arith.constant 0 : i32
    return %arg0, %c0_i32 : i32, i32
  }
  func.func @transform_4(%arg0: i32) -> (i32, i32) {
    %c0_i32 = arith.constant 0 : i32
    %c0_i32_0 = arith.constant 0 : i32
    return %arg0, %c0_i32 : i32, i32
  }
  func.func @transform_5(%arg0: i32) -> (i32, i32) {
    %c0_i32 = arith.constant 0 : i32
    %c0_i32_0 = arith.constant 0 : i32
    return %arg0, %c0_i32 : i32, i32
  }
}

</mosaic_0001>

<llo_original>
// kernel: independent_dropout.3
$region0: #{independent_dropout.3}
  #allocation0 [shape = 'u32[]', space=smem, size = 0x4, offset = 0x4, fixed_abs, tag = 'smem constant byte address 0x4 - core index']
  #allocation1 [shape = 'u32[144,128]{1,0:T(1,128)}', space=vmem, size = 0x12000, scoped, tag = 'internal scratch']
  %s0 = inlined_call_operand.vmem [shape: f32[16,1], index: 0, kind: input, shape index: {}]
  %s1 = inlined_call_operand.vmem [shape: f32[16,1], index: 1, kind: input, shape index: {}]
  %s2 = inlined_call_operand.vmem [shape: f32[16,32], index: 2, kind: input, shape index: {}]
  %s3 = inlined_call_operand.vmem [shape: f32[16,32], index: 3, kind: input, shape index: {}]
  %s4 = inlined_call_operand.hbm [shape: f32[16,32], index: 4, kind: output, shape index: {0}]
  %s5 = inlined_call_operand.hbm [shape: f32[16,32], index: 5, kind: output, shape index: {1}]
  %6 = xla_tuple %s4, %s5
  %s7 = sld [smem:[#allocation0]]
  $region34: #{independent_dropout.3} parent=0
    _
  %s9 = ssub.s32 1, %s7
  %s10 = scalar_select 0, %s9, %s7
  $region1: #{independent_dropout.3} parent=0
    #allocation2 [shape = 'u8[8192]{0}', space=vmem, size = 0x2000, scoped, tag = 'output window, operand 0, single buffered']
    #allocation3 [shape = 's32[1]{0}', space=sflag, size = 0x4, scoped, tag = 'scoped memory for independent_dropout.3']
    #allocation4 [shape = 'u8[8192]{0}', space=vmem, size = 0x2000, scoped, tag = 'output window, operand 1, single buffered']
    #allocation5 [shape = 's32[1]{0}', space=sflag, size = 0x4, scoped, tag = 'scoped memory for independent_dropout.3']
    %11 = vsyncpa [#allocation3], 0
    %12 = vsyncpa [#allocation5], 0
    // Predicated region
    $region2: #{independent_dropout.3} parent=1 // pred_check
      _
    $region3: #{independent_dropout.3} parent=1 // pred_check_branch
      %14 = sbr.rel (0) target = $region5
    $region4: #{independent_dropout.3} parent=1 // pred_region
      _
    $region5: #{independent_dropout.3} parent=1 // pred_fallthru
      _
    // Predicated region
    $region6: #{independent_dropout.3} parent=1 // pred_check
      _
    $region7: #{independent_dropout.3} parent=1 // pred_check_branch
      %16 = sbr.rel (0) target = $region9
    $region8: #{independent_dropout.3} parent=1 // pred_region
      _
    $region9: #{independent_dropout.3} parent=1 // pred_fallthru
      _
    // Predicated region
    $region10: #{independent_dropout.3} parent=1 // pred_check
      _
    $region11: #{independent_dropout.3} parent=1 // pred_check_branch
      %18 = sbr.rel (0) target = $region13
    $region12: #{independent_dropout.3} parent=1 // pred_region
      _
    $region13: #{independent_dropout.3} parent=1 // pred_fallthru
      _
    // Predicated region
    $region14: #{independent_dropout.3} parent=1 // pred_check
      _
    $region15: #{independent_dropout.3} parent=1 // pred_check_branch
      %20 = sbr.rel (0) target = $region17
    $region16: #{independent_dropout.3} parent=1 // pred_region
      _
    $region17: #{independent_dropout.3} parent=1 // pred_fallthru
      _
    %v21 = vld [vmem:[%s0] sm:$0xff]
    %v22 = vld [vmem:[%s0 + $0x8] sm:$0xff]
    %v23 = vld [vmem:[%s1] sm:$0xff]
    %v24 = vld [vmem:[%s1 + $0x8] sm:$0xff]
    %v25 = vadd.f32 %v21, %v23
    %v26 = vadd.f32 %v22, %v24
    %v27 = vmax.f32 %v25, 1.0
    %v28 = vmax.f32 %v26, 1.0
    %v29 = vrcp.pop %v27
    %v30 = vmul.f32 2.0, %v29
    %v31 = vrcp.pop %v28
    %v32 = vmul.f32 2.0, %v31
    %v33 = vmul.f32 %v21, %v30
    %v34 = vmul.f32 %v22, %v32
    %v35 = vld [vmem:[%s2] sm:$0xff]
    %v36 = vld [vmem:[%s2 + $0x8] sm:$0xff]
    %38 = vset.pattern.permute.xlu0 0
    %39 = vperm.xlu0 %38, %v33
    %v40 = vpop.permute.xlu0 %39
    %43 = vset.pattern.permute.xlu0 0
    %44 = vperm.xlu0 %43, %v34
    %v45 = vpop.permute.xlu0 %44
    %v47 = vmul.f32 %v35, %v40
    %v48 = vmul.f32 %v36, %v45
    %vm49 = vcmask 261120
    %50 = vst.msk [vmem:[#allocation2] sm:$0xff] %vm49, %v47
    %51 = vst.msk [vmem:[#allocation2 + $0x8] sm:$0xff] %vm49, %v48
    %v52 = vmul.f32 %v23, %v30
    %v53 = vmul.f32 %v24, %v32
    %v54 = vld [vmem:[%s3] sm:$0xff]
    %v55 = vld [vmem:[%s3 + $0x8] sm:$0xff]
    %57 = vset.pattern.permute.xlu0 0
    %58 = vperm.xlu0 %57, %v52
    %v59 = vpop.permute.xlu0 %58
    %62 = vset.pattern.permute.xlu0 0
    %63 = vperm.xlu0 %62, %v53
    %v64 = vpop.permute.xlu0 %63
    %v66 = vmul.f32 %v54, %v59
    %v67 = vmul.f32 %v55, %v64
    %68 = vst.msk [vmem:[#allocation4] sm:$0xff] %vm49, %v66
    %69 = vst.msk [vmem:[#allocation4 + $0x8] sm:$0xff] %vm49, %v67
    // Predicated region
    $region18: #{independent_dropout.3} parent=1 // pred_check
      _
    $region19: #{independent_dropout.3} parent=1 // pred_check_branch
      %71 = sbr.rel (0) target = $region21
    $region20: #{independent_dropout.3} parent=1 // pred_region
      %s73 = ssub.s32 256, 256
      %74 = vsyncadd [#allocation3], %s73
      %s75 = sshll.u32 [#allocation2], 4
      %s76 = int_to_ptr.vmem [resolvable:$true] %s75
      %81 = dma.vmem_to_hbm [thread:$0]  %s76, 256, %s4, [#allocation3], 128, 128, 8
    $region21: #{independent_dropout.3} parent=1 // pred_fallthru
      _
    // Predicated region
    $region22: #{independent_dropout.3} parent=1 // pred_check
      _
    $region23: #{independent_dropout.3} parent=1 // pred_check_branch
      %83 = sbr.rel (0) target = $region25
    $region24: #{independent_dropout.3} parent=1 // pred_region
      %s85 = ssub.s32 256, 256
      %86 = vsyncadd [#allocation5], %s85
      %s87 = sshll.u32 [#allocation4], 4
      %s88 = int_to_ptr.vmem [resolvable:$true] %s87
      %93 = dma.vmem_to_hbm [thread:$0]  %s88, 256, %s5, [#allocation5], 128, 128, 8
    $region25: #{independent_dropout.3} parent=1 // pred_fallthru
      _
    // Predicated region
    $region26: #{independent_dropout.3} parent=1 // pred_check
      _
    $region27: #{independent_dropout.3} parent=1 // pred_check_branch
      %95 = sbr.rel (0) target = $region29
    $region28: #{independent_dropout.3} parent=1 // pred_region
      %96 = dma.done [#allocation3], 256
    $region29: #{independent_dropout.3} parent=1 // pred_fallthru
      _
    // Predicated region
    $region30: #{independent_dropout.3} parent=1 // pred_check
      _
    $region31: #{independent_dropout.3} parent=1 // pred_check_branch
      %98 = sbr.rel (0) target = $region33
    $region32: #{independent_dropout.3} parent=1 // pred_region
      %99 = dma.done [#allocation5], 256
    $region33: #{independent_dropout.3} parent=1 // pred_fallthru
      _
    %100 = vsyncpa [#allocation3], 1
    %101 = vsyncpa [#allocation5], 1

</llo_original>
